<compile_context>
chip_gen: v6e
topology: v6e:2x2x1
jax: 0.10.0
libtpu: 0.0.40
codegen_flags: <defaults>
</compile_context>

<pallas_src>
import functools

import jax
import jax.numpy as jnp
import numpy as np
from jax.experimental import pallas as pl
from jax.experimental.pallas import tpu as pltpu

SCALING = 0.2            # LeakyReLU negative slope
_NEG_BIG = -1e30         # score assigned to non-edges


def _leaky(x, slope):
    return jnp.where(x >= 0, x, slope * x)


def _round_up(x, m):
    return (x + m - 1) // m * m


def _tpu_vmem_bytes():
    try:
        return int(pltpu.get_tpu_info().vmem_capacity_bytes)
    except Exception:                       # conservative fallback (v7x-sized)
        return 64 * 1024 * 1024


# ---------------------------------------------------------------------------
# Kernel 1: node projection + fused attention-score mat-vec.
# ---------------------------------------------------------------------------
def _proj_kernel(x_ref, w_ref, bw_ref, a12_ref, ab_ref, h_ref, s_ref):
    # x_ref   : (TM, Fp) bf16   node features tile (zero-padded)
    # w_ref   : (Fp, Hp) bf16   W.T (zero-padded)
    # bw_ref  : (1, Hp)  f32    linear bias
    # a12_ref : (Hp, 2)  f32    [a_target | a_source]
    # ab_ref  : (1, 2)   f32    [attn_bias, 0]
    # h_ref   : (TM, Hp) bf16   projected features
    # s_ref   : (TM, 2)  f32    [a_tgt.h + b_attn, a_src.h]
    h = jnp.dot(x_ref[...], w_ref[...], preferred_element_type=jnp.float32)
    h = _leaky(h + bw_ref[...], SCALING)
    s_ref[...] = (
        jnp.dot(h, a12_ref[...], preferred_element_type=jnp.float32) + ab_ref[...]
    )
    h_ref[...] = h.astype(h_ref.dtype)


# ---------------------------------------------------------------------------
# Kernel 2: compressed-grid masked online softmax + message aggregation.
# ---------------------------------------------------------------------------
def _attn_kernel(klist_ref, cnt_ref, s1_ref, s2_ref, h_ref, adj_ref, out_ref,
                 m_scr, l_scr, *, tk, max_nnz, h_resident):
    # klist_ref : (gi*max_nnz,) int32 SMEM  source-tile block index per step
    # cnt_ref   : (gi*max_nnz,) int32 SMEM  edges in that tile (0 => padding)
    # s1_ref    : (TQ, 1)  f32    a_tgt.h_i + b_attn for target tile
    # s2_ref    : (1, TK)  f32    a_src.h_j for source tile
    # h_ref     : (N, Hp) or (TK, Hp) bf16  projected source features
    # adj_ref   : (TQ, TK) int8   adj[target, source]
    # out_ref   : (TQ, Hp) f32    resident accumulator / final output
    i = pl.program_id(0)              # target tile (parallel)
    j = pl.program_id(1)              # position in this tile's non-empty list
    idx = i * max_nnz + j

    @pl.when(j == 0)
    def _init():
        m_scr[...] = jnp.full_like(m_scr, _NEG_BIG)
        l_scr[...] = jnp.zeros_like(l_scr)
        out_ref[...] = jnp.zeros_like(out_ref)

    # Padding entries (cnt == 0) skip both softmax math and the matmul.
    @pl.when(cnt_ref[idx] > 0)
    def _update():
        if h_resident:
            start = pl.multiple_of(klist_ref[idx] * tk, tk)
            h_blk = h_ref[pl.ds(start, tk), :]
        else:
            h_blk = h_ref[...]

        mask = adj_ref[...] > 0                                 # (TQ, TK)
        e = jnp.where(mask, s1_ref[...] + s2_ref[...], _NEG_BIG)

        m_prev = m_scr[...]
        m_new = jnp.maximum(m_prev, jnp.max(e, axis=-1, keepdims=True))
        corr = jnp.exp(m_prev - m_new)
        # Single select: masked entries carry e == -1e30 so exp underflows to 0
        # once m_new is finite; rows that never see an edge are fixed up in
        # _finalize via the m-guard (online-softmax corr self-heals otherwise).
        p = jnp.exp(e - m_new)

        l_scr[...] = corr * l_scr[...] + jnp.sum(p, axis=-1, keepdims=True)
        out_ref[...] = corr * out_ref[...] + jnp.dot(
            p.astype(h_blk.dtype), h_blk, preferred_element_type=jnp.float32)
        m_scr[...] = m_new

    @pl.when(j == pl.num_programs(1) - 1)
    def _finalize():
        l = l_scr[...]
        seen = (l > 0.0) & (m_scr[...] > 0.5 * _NEG_BIG)
        inv = jnp.where(seen, pl.reciprocal(l, approx=True), 0.0)
        out_ref[...] = _leaky(out_ref[...] * inv, SCALING)


# ---------------------------------------------------------------------------
# Wrapper: padding, bf16 packing, compressed tile lists, pallas_calls.
# ---------------------------------------------------------------------------
def graph_attention_forward(node_features, edge_index, params, *, max_tile=None):
    """GraphAttentionLayerV1 forward (dropout as identity).

    NOTE: the source-tile compression inspects edge_index on the host, so this
    wrapper is intended to be called eagerly per graph, not under jit.
    """
    x = node_features
    n_nodes, n_feat = x.shape
    n_hidden = params["w_bias"].shape[0]

    # ---- per-generation sizing ----------------------------------------------
    vmem_cap = _tpu_vmem_bytes()
    if vmem_cap >= 128 * 1024 * 1024:          # v5e / v6e (128 MiB VMEM)
        vmem_limit = 96 * 1024 * 1024
        default_tile = 1024
        h_budget = 24 * 1024 * 1024            # resident-h budget
    else:                                      # v7x (64 MiB physical VMEM)
        vmem_limit = 32 * 1024 * 1024
        default_tile = 512
        h_budget = 8 * 1024 * 1024
    if max_tile is None:
        max_tile = default_tile

    # ---- padding / tiling ---------------------------------------------------
    h_pad = _round_up(n_hidden, 128)           # lane-dense hidden dim
    f_pad = _round_up(n_feat, 128)             # lane-dense feature dim
    n_pad = _round_up(n_nodes, 128)
    tile = min(max_tile, n_pad)
    while n_pad % tile:                        # keep tile a divisor of n_pad
        tile -= 128
    tq = tk = tile
    gi, gk = n_pad // tq, n_pad // tk

    # ---- parameter / input packing (bf16 MXU inputs, f32 score math) --------
    w_t = jnp.zeros((f_pad, h_pad), jnp.bfloat16).at[:n_feat, :n_hidden].set(
        params["w_weight"].T.astype(jnp.bfloat16))
    bw = jnp.zeros((1, h_pad), jnp.float32).at[:, :n_hidden].set(
        params["w_bias"][None, :].astype(jnp.float32))
    a = params["attn_weight"][0].astype(jnp.float32)
    a12 = (jnp.zeros((h_pad, 2), jnp.float32)
           .at[:n_hidden, 0].set(a[:n_hidden])
           .at[:n_hidden, 1].set(a[n_hidden:]))
    ab = jnp.zeros((1, 2), jnp.float32).at[0, 0].set(
        params["attn_bias"][0].astype(jnp.float32))
    x_pad = jnp.zeros((n_pad, f_pad), jnp.bfloat16).at[:n_nodes, :n_feat].set(
        x.astype(jnp.bfloat16))

    # ---- adjacency + compressed per-target source-tile lists ----------------
    tgt = edge_index[0]
    src = edge_index[1]
    adj = jnp.zeros((n_pad, n_pad), jnp.int8).at[tgt, src].set(1)

    # O(E) tile-level edge counts (host side); no n_pad^2 reduction in HBM.
    tgt_np = np.asarray(jax.device_get(tgt)).astype(np.int64)
    src_np = np.asarray(jax.device_get(src)).astype(np.int64)
    counts = np.zeros((gi, gk), np.int64)
    np.add.at(counts, (tgt_np // tq, src_np // tk), 1)
    nnz_per_row = (counts > 0).sum(axis=1)
    max_nnz = max(int(nnz_per_row.max()), 1)
    klist = np.zeros((gi, max_nnz), np.int32)
    cnts = np.zeros((gi, max_nnz), np.int32)
    for r in range(gi):
        ks = np.nonzero(counts[r])[0]
        klist[r, :ks.size] = ks
        cnts[r, :ks.size] = counts[r, ks]
    klist_flat = jnp.asarray(klist.reshape(-1))
    cnt_flat = jnp.asarray(cnts.reshape(-1))

    # ---- kernel 1: projection + fused attention-score mat-vec ---------------
    h_bf, s = pl.pallas_call(
        _proj_kernel,
        out_shape=(
            jax.ShapeDtypeStruct((n_pad, h_pad), jnp.bfloat16),
            jax.ShapeDtypeStruct((n_pad, 2), jnp.float32),
        ),
        grid=(n_pad // tq,),
        in_specs=[
            pl.BlockSpec((tq, f_pad), lambda i: (i, 0)),
            pl.BlockSpec((f_pad, h_pad), lambda i: (0, 0)),
            pl.BlockSpec((1, h_pad), lambda i: (0, 0)),
            pl.BlockSpec((h_pad, 2), lambda i: (0, 0)),
            pl.BlockSpec((1, 2), lambda i: (0, 0)),
        ],
        out_specs=(
            pl.BlockSpec((tq, h_pad), lambda i: (i, 0)),
            pl.BlockSpec((tq, 2), lambda i: (i, 0)),
        ),
        compiler_params=pltpu.CompilerParams(
            dimension_semantics=("parallel",),
            vmem_limit_bytes=vmem_limit),
    )(x_pad, w_t, bw, a12, ab)

    s1 = s[:, 0:1]                          # (n_pad, 1) target score + attn bias
    s2_row = s[:, 1].reshape(1, n_pad)      # (1, n_pad) source scores

    # ---- kernel 2: compressed-grid online softmax + aggregation -------------
    h_resident = (n_pad * h_pad * 2) <= h_budget
    if h_resident:
        # Constant-index full block: h is DMA'd from HBM exactly once.
        h_spec = pl.BlockSpec((n_pad, h_pad), lambda i, j, kl, ct: (0, 0))
    else:
        h_spec = pl.BlockSpec(
            (tk, h_pad), lambda i, j, kl, ct: (kl[i * max_nnz + j], 0))

    kernel2 = functools.partial(
        _attn_kernel, tk=tk, max_nnz=max_nnz, h_resident=h_resident)

    out_pad = pl.pallas_call(
        kernel2,
        out_shape=jax.ShapeDtypeStruct((n_pad, h_pad), jnp.float32),
        grid_spec=pltpu.PrefetchScalarGridSpec(
            num_scalar_prefetch=2,
            grid=(gi, max_nnz),
            in_specs=[
                pl.BlockSpec((tq, 1), lambda i, j, kl, ct: (i, 0)),
                pl.BlockSpec((1, tk),
                             lambda i, j, kl, ct: (0, kl[i * max_nnz + j])),
                h_spec,
                pl.BlockSpec((tq, tk),
                             lambda i, j, kl, ct: (i, kl[i * max_nnz + j])),
            ],
            out_specs=pl.BlockSpec((tq, h_pad), lambda i, j, kl, ct: (i, 0)),
            scratch_shapes=[
                pltpu.VMEM((tq, 1), jnp.float32),      # running max m
                pltpu.VMEM((tq, 1), jnp.float32),      # running denom l
            ],
        ),
        compiler_params=pltpu.CompilerParams(
            dimension_semantics=("parallel", "arbitrary"),
            vmem_limit_bytes=vmem_limit),
    )(klist_flat, cnt_flat, s1, s2_row, h_bf, adj)

    return out_pad[:n_nodes, :n_hidden]


# ---------------------------------------------------------------------------
# Pure-JAX edge-wise reference (mirrors the torch_scatter formulation).
# ---------------------------------------------------------------------------
def _reference_forward(node_features, edge_index, params):
    x = node_features.astype(jnp.float32)
    n_nodes = x.shape[0]
    h = _leaky(x @ params["w_weight"].T + params["w_bias"], SCALING)
    n_hidden = h.shape[1]
    a = params["attn_weight"][0]
    ba = params["attn_bias"][0]
    tgt = edge_index[0]
    src = edge_index[1]
    e = h[tgt] @ a[:n_hidden] + h[src] @ a[n_hidden:] + ba          # (E,)
    e_max = jax.ops.segment_max(e, tgt, num_segments=n_nodes)
    p = jnp.exp(e - e_max[tgt])
    denom = jax.ops.segment_sum(p, tgt, num_segments=n_nodes)
    alpha = p / denom[tgt]
    msg = alpha[:, None] * h[src]                                   # (E, H)
    out = jax.ops.segment_sum(msg, tgt, num_segments=n_nodes)       # (N, H)
    return _leaky(out, SCALING)


def init_params(key, n_node_features, n_hidden_features):
    """Deterministic init mimicking nn.Linear defaults (uniform +-1/sqrt(fan_in))."""
    k1, k2, k3, k4 = jax.random.split(key, 4)
    lim_w = 1.0 / np.sqrt(n_node_features)
    lim_a = 1.0 / np.sqrt(2 * n_hidden_features)
    return {
        "w_weight": jax.random.uniform(
            k1, (n_hidden_features, n_node_features), jnp.float32, -lim_w, lim_w),
        "w_bias": jax.random.uniform(
            k2, (n_hidden_features,), jnp.float32, -lim_w, lim_w),
        "attn_weight": jax.random.uniform(
            k3, (1, 2 * n_hidden_features), jnp.float32, -lim_a, lim_a),
        "attn_bias": jax.random.uniform(
            k4, (1,), jnp.float32, -lim_a, lim_a),
    }


if __name__ == "__main__":
    N_NODES = 16
    N_NODE_FEATURES = 8
    N_HIDDEN = 32

    key = jax.random.PRNGKey(0)
    k_params, k_x = jax.random.split(key)

    params = init_params(k_params, N_NODE_FEATURES, N_HIDDEN)
    node_features = jax.random.normal(k_x, (N_NODES, N_NODE_FEATURES), jnp.float32)

    # Deterministic edge list (COO, row 0 = targets, row 1 = sources):
    # a bidirectional ring -> 2*N unique edges, every node has neighbors.
    idx = np.arange(N_NODES)
    targets = np.concatenate([idx, idx])
    sources = np.concatenate([(idx + 1) % N_NODES, (idx - 1) % N_NODES])
    edge_index = jnp.asarray(np.stack([targets, sources]), dtype=jnp.int32)  # (2, 2N)

    out = graph_attention_forward(node_features, edge_index, params)
    out = jax.block_until_ready(out)

    ref = _reference_forward(node_features, edge_index, params)
    # bf16 MXU inputs (projection + aggregation) and approx reciprocal give
    # ~1e-2-level error; tolerance loosened accordingly.
    np.testing.assert_allclose(np.asarray(out), np.asarray(ref), rtol=3e-2, atol=3e-2)

    print("KERNEL_OK")
</pallas_src>

<mosaic_0001>
module attributes {stable_mosaic.version = 11 : i64} {
  func.func @_proj_kernel(%arg0: i32, %arg1: memref<128x128xbf16, #tpu.memory_space<vmem>>, %arg2: memref<128x128xbf16, #tpu.memory_space<vmem>>, %arg3: memref<1x128xf32, #tpu.memory_space<vmem>>, %arg4: memref<128x2xf32, #tpu.memory_space<vmem>>, %arg5: memref<1x2xf32, #tpu.memory_space<vmem>>, %arg6: memref<128x128xbf16, #tpu.memory_space<vmem>>, %arg7: memref<128x2xf32, #tpu.memory_space<vmem>>) attributes {dimension_semantics = [#tpu.dimension_semantics<parallel>], iteration_bounds = array<i64: 1>, scalar_prefetch = 0 : i64, scratch_operands = 0 : i64, tpu.core_type = #tpu.core_type<tc>, window_params = [{transform_indices = @transform_0, window_bounds = array<i64: 128, 128>}, {pipeline_mode = #tpu.pipeline_mode<synchronous>, transform_indices = @transform_1, window_bounds = array<i64: 128, 128>}, {pipeline_mode = #tpu.pipeline_mode<synchronous>, transform_indices = @transform_2, window_bounds = array<i64: 1, 128>}, {pipeline_mode = #tpu.pipeline_mode<synchronous>, transform_indices = @transform_3, window_bounds = array<i64: 128, 2>}, {pipeline_mode = #tpu.pipeline_mode<synchronous>, transform_indices = @transform_4, window_bounds = array<i64: 1, 2>}, {transform_indices = @transform_5, window_bounds = array<i64: 128, 128>}, {transform_indices = @transform_6, window_bounds = array<i64: 128, 2>}]} {
    %c0 = arith.constant 0 : index
    %c0_0 = arith.constant 0 : index
    %0 = vector.load %arg1[%c0, %c0_0] : memref<128x128xbf16, #tpu.memory_space<vmem>>, vector<128x128xbf16>
    %c0_1 = arith.constant 0 : index
    %c0_2 = arith.constant 0 : index
    %1 = vector.load %arg2[%c0_1, %c0_2] : memref<128x128xbf16, #tpu.memory_space<vmem>>, vector<128x128xbf16>
    %cst = arith.constant dense<0.000000e+00> : vector<128x128xf32>
    %2 = tpu.matmul %0, %1, %cst {dimension_numbers = #tpu.dot_dimension_numbers<[1], [0], [0], [1], [0, 0, 1, 1], [], []>} : vector<128x128xbf16>, vector<128x128xbf16>, vector<128x128xf32> -> vector<128x128xf32>
    %c0_3 = arith.constant 0 : index
    %c0_4 = arith.constant 0 : index
    %3 = vector.load %arg3[%c0_3, %c0_4] : memref<1x128xf32, #tpu.memory_space<vmem>>, vector<1x128xf32>
    %4 = vector.broadcast %3 : vector<1x128xf32> to vector<128x128xf32>
    %5 = arith.addf %2, %4 : vector<128x128xf32>
    %cst_5 = arith.constant 0.000000e+00 : f32
    %6 = vector.broadcast %cst_5 : f32 to vector<128x128xf32>
    %7 = arith.cmpf oge, %5, %6 : vector<128x128xf32>
    %cst_6 = arith.constant 2.000000e-01 : f32
    %8 = vector.broadcast %cst_6 : f32 to vector<128x128xf32>
    %9 = arith.mulf %8, %5 : vector<128x128xf32>
    %10 = arith.select %7, %5, %9 : vector<128x128xi1>, vector<128x128xf32>
    %c0_7 = arith.constant 0 : index
    %c0_8 = arith.constant 0 : index
    %11 = vector.load %arg4[%c0_7, %c0_8] : memref<128x2xf32, #tpu.memory_space<vmem>>, vector<128x2xf32>
    %cst_9 = arith.constant dense<0.000000e+00> : vector<128x2xf32>
    %12 = tpu.matmul %10, %11, %cst_9 {dimension_numbers = #tpu.dot_dimension_numbers<[1], [0], [0], [1], [0, 0, 1, 1], [], []>} : vector<128x128xf32>, vector<128x2xf32>, vector<128x2xf32> -> vector<128x2xf32>
    %c0_10 = arith.constant 0 : index
    %c0_11 = arith.constant 0 : index
    %13 = vector.load %arg5[%c0_10, %c0_11] : memref<1x2xf32, #tpu.memory_space<vmem>>, vector<1x2xf32>
    %14 = vector.broadcast %13 : vector<1x2xf32> to vector<128x2xf32>
    %15 = arith.addf %12, %14 : vector<128x2xf32>
    %c0_12 = arith.constant 0 : index
    %c0_13 = arith.constant 0 : index
    %16 = vector.load %arg7[%c0_12, %c0_13] : memref<128x2xf32, #tpu.memory_space<vmem>>, vector<128x2xf32>
    tpu.vector_store %arg7[%c0_12, %c0_13], %15 {strides = array<i32>} : memref<128x2xf32, #tpu.memory_space<vmem>>, vector<128x2xf32>,
    %17 = arith.truncf %10 : vector<128x128xf32> to vector<128x128xbf16>
    %c0_14 = arith.constant 0 : index
    %c0_15 = arith.constant 0 : index
    %18 = vector.load %arg6[%c0_14, %c0_15] : memref<128x128xbf16, #tpu.memory_space<vmem>>, vector<128x128xbf16>
    tpu.vector_store %arg6[%c0_14, %c0_15], %17 {strides = array<i32>} : memref<128x128xbf16, #tpu.memory_space<vmem>>, vector<128x128xbf16>,
    return
  }
  func.func @transform_0(%arg0: i32) -> (i32, i32) {
    %c0_i32 = arith.constant 0 : i32
    %c0_i32_0 = arith.constant 0 : i32
    return %arg0, %c0_i32 : i32, i32
  }
  func.func @transform_1(%arg0: i32) -> (i32, i32) {
    %c0_i32 = arith.constant 0 : i32
    %c0_i32_0 = arith.constant 0 : i32
    %c0_i32_1 = arith.constant 0 : i32
    return %c0_i32, %c0_i32_0 : i32, i32
  }
  func.func @transform_2(%arg0: i32) -> (i32, i32) {
    %c0_i32 = arith.constant 0 : i32
    %c0_i32_0 = arith.constant 0 : i32
    %c0_i32_1 = arith.constant 0 : i32
    return %c0_i32, %c0_i32_0 : i32, i32
  }
  func.func @transform_3(%arg0: i32) -> (i32, i32) {
    %c0_i32 = arith.constant 0 : i32
    %c0_i32_0 = arith.constant 0 : i32
    %c0_i32_1 = arith.constant 0 : i32
    return %c0_i32, %c0_i32_0 : i32, i32
  }
  func.func @transform_4(%arg0: i32) -> (i32, i32) {
    %c0_i32 = arith.constant 0 : i32
    %c0_i32_0 = arith.constant 0 : i32
    %c0_i32_1 = arith.constant 0 : i32
    return %c0_i32, %c0_i32_0 : i32, i32
  }
  func.func @transform_5(%arg0: i32) -> (i32, i32) {
    %c0_i32 = arith.constant 0 : i32
    %c0_i32_0 = arith.constant 0 : i32
    return %arg0, %c0_i32 : i32, i32
  }
  func.func @transform_6(%arg0: i32) -> (i32, i32) {
    %c0_i32 = arith.constant 0 : i32
    %c0_i32_0 = arith.constant 0 : i32
    return %arg0, %c0_i32 : i32, i32
  }
}

</mosaic_0001>

<llo_original>
// kernel: tpu_custom_call.1
$region0: #{tpu_custom_call.1}
  #allocation0 [shape = 'u32[]', space=smem, size = 0x4, offset = 0x4, fixed_abs, tag = 'smem constant byte address 0x4 - core index']
  #allocation1 [shape = 'u32[144,128]{1,0:T(1,128)}', space=vmem, size = 0x12000, scoped, tag = 'internal scratch']
  %s0 = inlined_call_operand.vmem [shape: bf16[128,128], index: 0, kind: input, shape index: {}]
  %s1 = inlined_call_operand.vmem [shape: bf16[128,128], index: 1, kind: input, shape index: {}]
  %s2 = inlined_call_operand.vmem [shape: f32[1,128], index: 2, kind: input, shape index: {}]
  %s3 = inlined_call_operand.vmem [shape: f32[128,2], index: 3, kind: input, shape index: {}]
  %s4 = inlined_call_operand.vmem [shape: f32[1,2], index: 4, kind: input, shape index: {}]
  %s5 = inlined_call_operand.hbm [shape: bf16[128,128], index: 5, kind: output, shape index: {0}]
  %s6 = inlined_call_operand.vmem [shape: f32[128,2], index: 6, kind: output, shape index: {1}]
  %7 = xla_tuple %s5, %s6
  %s8 = sld [smem:[#allocation0]]
  $region38: #{tpu_custom_call.1} parent=0
    _
  %s10 = ssub.s32 1, %s8
  %s11 = scalar_select 0, %s10, %s8
  $region1: #{tpu_custom_call.1} parent=0
    #allocation2 [shape = 'u8[32768]{0}', space=vmem, size = 0x8000, scoped, tag = 'output window, operand 0, single buffered']
    #allocation3 [shape = 's32[1]{0}', space=sflag, size = 0x4, scoped, tag = 'scoped memory for tpu_custom_call.1']
    %12 = vsyncpa [#allocation3], 0
    // Predicated region
    $region2: #{tpu_custom_call.1} parent=1 // pred_check
      _
    $region3: #{tpu_custom_call.1} parent=1 // pred_check_branch
      %14 = sbr.rel (0) target = $region5
    $region4: #{tpu_custom_call.1} parent=1 // pred_region
      _
    $region5: #{tpu_custom_call.1} parent=1 // pred_fallthru
      _
    // Predicated region
    $region6: #{tpu_custom_call.1} parent=1 // pred_check
      _
    $region7: #{tpu_custom_call.1} parent=1 // pred_check_branch
      %16 = sbr.rel (0) target = $region9
    $region8: #{tpu_custom_call.1} parent=1 // pred_region
      _
    $region9: #{tpu_custom_call.1} parent=1 // pred_fallthru
      _
    // Predicated region
    $region10: #{tpu_custom_call.1} parent=1 // pred_check
      _
    $region11: #{tpu_custom_call.1} parent=1 // pred_check_branch
      %18 = sbr.rel (0) target = $region13
    $region12: #{tpu_custom_call.1} parent=1 // pred_region
      _
    $region13: #{tpu_custom_call.1} parent=1 // pred_fallthru
      _
    // Predicated region
    $region14: #{tpu_custom_call.1} parent=1 // pred_check
      _
    $region15: #{tpu_custom_call.1} parent=1 // pred_check_branch
      %20 = sbr.rel (0) target = $region17
    $region16: #{tpu_custom_call.1} parent=1 // pred_region
      _
    $region17: #{tpu_custom_call.1} parent=1 // pred_fallthru
      _
    // Predicated region
    $region18: #{tpu_custom_call.1} parent=1 // pred_check
      _
    $region19: #{tpu_custom_call.1} parent=1 // pred_check_branch
      %22 = sbr.rel (0) target = $region21
    $region20: #{tpu_custom_call.1} parent=1 // pred_region
      _
    $region21: #{tpu_custom_call.1} parent=1 // pred_fallthru
      _
    %v24 = vld [vmem:[%s0] sm:$0xf]
    %v25 = vld [vmem:[%s0 + $0x4] sm:$0xf]
    %v26 = vld [vmem:[%s0 + $0x8] sm:$0xf]
    %v27 = vld [vmem:[%s0 + $0xc] sm:$0xf]
    %v28 = vld [vmem:[%s0 + $0x10] sm:$0xf]
    %v29 = vld [vmem:[%s0 + $0x14] sm:$0xf]
    %v30 = vld [vmem:[%s0 + $0x18] sm:$0xf]
    %v31 = vld [vmem:[%s0 + $0x1c] sm:$0xf]
    %v32 = vld [vmem:[%s0 + $0x20] sm:$0xf]
    %v33 = vld [vmem:[%s0 + $0x24] sm:$0xf]
    %v34 = vld [vmem:[%s0 + $0x28] sm:$0xf]
    %v35 = vld [vmem:[%s0 + $0x2c] sm:$0xf]
    %v36 = vld [vmem:[%s0 + $0x30] sm:$0xf]
    %v37 = vld [vmem:[%s0 + $0x34] sm:$0xf]
    %v38 = vld [vmem:[%s0 + $0x38] sm:$0xf]
    %v39 = vld [vmem:[%s0 + $0x3c] sm:$0xf]
    %v40 = vld [vmem:[%s1] sm:$0xf]
    %v41 = vld [vmem:[%s1 + $0x4] sm:$0xf]
    %v42 = vld [vmem:[%s1 + $0x8] sm:$0xf]
    %v43 = vld [vmem:[%s1 + $0xc] sm:$0xf]
    %v44 = vld [vmem:[%s1 + $0x10] sm:$0xf]
    %v45 = vld [vmem:[%s1 + $0x14] sm:$0xf]
    %v46 = vld [vmem:[%s1 + $0x18] sm:$0xf]
    %v47 = vld [vmem:[%s1 + $0x1c] sm:$0xf]
    %v48 = vld [vmem:[%s1 + $0x20] sm:$0xf]
    %v49 = vld [vmem:[%s1 + $0x24] sm:$0xf]
    %v50 = vld [vmem:[%s1 + $0x28] sm:$0xf]
    %v51 = vld [vmem:[%s1 + $0x2c] sm:$0xf]
    %v52 = vld [vmem:[%s1 + $0x30] sm:$0xf]
    %v53 = vld [vmem:[%s1 + $0x34] sm:$0xf]
    %v54 = vld [vmem:[%s1 + $0x38] sm:$0xf]
    %v55 = vld [vmem:[%s1 + $0x3c] sm:$0xf]
    %v56 = vld [vmem:[%s2] sm:$0x1]
    %v58 = vlaneseq
    %v59 = vshrl.u32 %v58, 7
    %v60 = vsub.s32 0, %v59
    %v61 = vrot.slane %v56, %v60
    %v79 = vunpack.c.l.b16 %v24
    %v80 = vunpack.c.l.b16 %v25
    %v81 = vunpack.c.l.b16 %v26
    %v82 = vunpack.c.l.b16 %v27
    %v83 = vunpack.c.l.b16 %v28
    %v84 = vunpack.c.l.b16 %v29
    %v85 = vunpack.c.l.b16 %v30
    %v86 = vunpack.c.l.b16 %v31
    %v87 = vunpack.c.l.b16 %v32
    %v88 = vunpack.c.l.b16 %v33
    %v89 = vunpack.c.l.b16 %v34
    %v90 = vunpack.c.l.b16 %v35
    %v91 = vunpack.c.l.b16 %v36
    %v92 = vunpack.c.l.b16 %v37
    %v93 = vunpack.c.l.b16 %v38
    %v94 = vunpack.c.l.b16 %v39
    %v95 = vpack.c.b16 %v80, %v79
    %v96 = vpack.c.b16 %v82, %v81
    %v97 = vpack.c.b16 %v84, %v83
    %v98 = vpack.c.b16 %v86, %v85
    %v99 = vpack.c.b16 %v88, %v87
    %v100 = vpack.c.b16 %v90, %v89
    %v101 = vpack.c.b16 %v92, %v91
    %v102 = vpack.c.b16 %v94, %v93
    %v127 = vunpack.c.l.b16 %v40
    %v128 = vunpack.c.l.b16 %v41
    %v129 = vunpack.c.l.b16 %v42
    %v130 = vunpack.c.l.b16 %v43
    %v131 = vunpack.c.l.b16 %v44
    %v132 = vunpack.c.l.b16 %v45
    %v133 = vunpack.c.l.b16 %v46
    %v134 = vunpack.c.l.b16 %v47
    %v135 = vunpack.c.l.b16 %v48
    %v136 = vunpack.c.l.b16 %v49
    %v137 = vunpack.c.l.b16 %v50
    %v138 = vunpack.c.l.b16 %v51
    %v139 = vunpack.c.l.b16 %v52
    %v140 = vunpack.c.l.b16 %v53
    %v141 = vunpack.c.l.b16 %v54
    %v142 = vunpack.c.l.b16 %v55
    %v143 = vpack.c.b16 %v128, %v127
    %v144 = vpack.c.b16 %v130, %v129
    %v145 = vpack.c.b16 %v132, %v131
    %v146 = vpack.c.b16 %v134, %v133
    %v147 = vpack.c.b16 %v136, %v135
    %v148 = vpack.c.b16 %v138, %v137
    %v149 = vpack.c.b16 %v140, %v139
    %v150 = vpack.c.b16 %v142, %v141
    %159 = vmatprep.subr.bf16.mxu0 0
    %160 = vmatpush1.bf16.msra.mxu0 %v150
    %161 = vmatprep.subr.bf16.mxu0 0
    %162 = vmatpush1.bf16.msra.mxu0 %v149
    %163 = vmatprep.subr.bf16.mxu0 0
    %164 = vmatpush1.bf16.msra.mxu0 %v148
    %165 = vmatprep.subr.bf16.mxu0 0
    %166 = vmatpush1.bf16.msra.mxu0 %v147
    %167 = vmatprep.subr.bf16.mxu0 0
    %168 = vmatpush1.bf16.msra.mxu0 %v146
    %169 = vmatprep.subr.bf16.mxu0 0
    %170 = vmatpush1.bf16.msra.mxu0 %v145
    %171 = vmatprep.subr.bf16.mxu0 0
    %172 = vmatpush1.bf16.msra.mxu0 %v144
    %173 = vmatprep.subr.bf16.mxu0 0
    %174 = vmatpush1.bf16.msra.mxu0 %v143
    %175 = vmatprep.subr.bf16.mxu0 0
    %176 = vmatpush2.bf16.msra.mxu0 0
    %177 = vmatprep.subr.bf16.mxu0 0
    %178 = vmatpush2.bf16.msra.mxu0 0
    %179 = vmatprep.subr.bf16.mxu0 0
    %180 = vmatpush2.bf16.msra.mxu0 0
    %181 = vmatprep.subr.bf16.mxu0 0
    %182 = vmatpush2.bf16.msra.mxu0 0
    %183 = vmatprep.subr.bf16.mxu0 0
    %184 = vmatpush2.bf16.msra.mxu0 0
    %185 = vmatprep.subr.bf16.mxu0 0
    %186 = vmatpush2.bf16.msra.mxu0 0
    %187 = vmatprep.subr.bf16.mxu0 0
    %188 = vmatpush2.bf16.msra.mxu0 0
    %189 = vmatprep.subr.bf16.mxu0 0
    %190 = vmatpush2.bf16.msra.mxu0 0
    %191 = vmatprep.mubr.bf16.mxu0 0
    %192 = vmatmul.mubr.bf16.gmra.mxu0 %v95
    %v193 = vpop.f32.mrf.mxu0
    %v194 = vadd.f32 %v61, %v193
    %v195 = vpop.f32.mrf.mxu0
    %v196 = vpop.f32.mrf.mxu0
    %v197 = vadd.f32 %v61, %v196
    %v198 = vpop.f32.mrf.mxu0
    %199 = vmatprep.mubr.bf16.mxu0 0
    %200 = vmatmul.mubr.bf16.gmra.mxu0 %v96
    %v201 = vpop.f32.mrf.mxu0
    %v202 = vadd.f32 %v61, %v201
    %v203 = vpop.f32.mrf.mxu0
    %v204 = vpop.f32.mrf.mxu0
    %v205 = vadd.f32 %v61, %v204
    %v206 = vpop.f32.mrf.mxu0
    %207 = vmatprep.mubr.bf16.mxu0 0
    %208 = vmatmul.mubr.bf16.gmra.mxu0 %v97
    %v209 = vpop.f32.mrf.mxu0
    %v210 = vadd.f32 %v61, %v209
    %v211 = vpop.f32.mrf.mxu0
    %v212 = vpop.f32.mrf.mxu0
    %v213 = vadd.f32 %v61, %v212
    %v214 = vpop.f32.mrf.mxu0
    %215 = vmatprep.mubr.bf16.mxu0 0
    %216 = vmatmul.mubr.bf16.gmra.mxu0 %v98
    %v217 = vpop.f32.mrf.mxu0
    %v218 = vadd.f32 %v61, %v217
    %v219 = vpop.f32.mrf.mxu0
    %v220 = vpop.f32.mrf.mxu0
    %v221 = vadd.f32 %v61, %v220
    %v222 = vpop.f32.mrf.mxu0
    %223 = vmatprep.mubr.bf16.mxu0 0
    %224 = vmatmul.mubr.bf16.gmra.mxu0 %v99
    %v225 = vpop.f32.mrf.mxu0
    %v226 = vadd.f32 %v61, %v225
    %v227 = vpop.f32.mrf.mxu0
    %v228 = vpop.f32.mrf.mxu0
    %v229 = vadd.f32 %v61, %v228
    %v230 = vpop.f32.mrf.mxu0
    %231 = vmatprep.mubr.bf16.mxu0 0
    %232 = vmatmul.mubr.bf16.gmra.mxu0 %v100
    %v233 = vpop.f32.mrf.mxu0
    %v234 = vadd.f32 %v61, %v233
    %v235 = vpop.f32.mrf.mxu0
    %v236 = vpop.f32.mrf.mxu0
    %v237 = vadd.f32 %v61, %v236
    %v238 = vpop.f32.mrf.mxu0
    %239 = vmatprep.mubr.bf16.mxu0 0
    %240 = vmatmul.mubr.bf16.gmra.mxu0 %v101
    %v241 = vpop.f32.mrf.mxu0
    %v242 = vadd.f32 %v61, %v241
    %v243 = vpop.f32.mrf.mxu0
    %v244 = vpop.f32.mrf.mxu0
    %v245 = vadd.f32 %v61, %v244
    %v246 = vpop.f32.mrf.mxu0
    %247 = vmatprep.mubr.bf16.mxu0 0
    %248 = vmatmul.mubr.bf16.gmra.mxu0 %v102
    %v249 = vpop.f32.mrf.mxu0
    %v250 = vadd.f32 %v61, %v249
    %v251 = vpop.f32.mrf.mxu0
    %v252 = vpop.f32.mrf.mxu0
    %v253 = vadd.f32 %v61, %v252
    %v254 = vpop.f32.mrf.mxu0
    %255 = vdwg.mxu0
    %vm256 = vcmp.ge.f32.partialorder %v194, 0.0
    %vm257 = vcmp.ge.f32.partialorder %v197, 0.0
    %vm258 = vcmp.ge.f32.partialorder %v202, 0.0
    %vm259 = vcmp.ge.f32.partialorder %v205, 0.0
    %vm260 = vcmp.ge.f32.partialorder %v210, 0.0
    %vm261 = vcmp.ge.f32.partialorder %v213, 0.0
    %vm262 = vcmp.ge.f32.partialorder %v218, 0.0
    %vm263 = vcmp.ge.f32.partialorder %v221, 0.0
    %vm264 = vcmp.ge.f32.partialorder %v226, 0.0
    %vm265 = vcmp.ge.f32.partialorder %v229, 0.0
    %vm266 = vcmp.ge.f32.partialorder %v234, 0.0
    %vm267 = vcmp.ge.f32.partialorder %v237, 0.0
    %vm268 = vcmp.ge.f32.partialorder %v242, 0.0
    %vm269 = vcmp.ge.f32.partialorder %v245, 0.0
    %vm270 = vcmp.ge.f32.partialorder %v250, 0.0
    %vm271 = vcmp.ge.f32.partialorder %v253, 0.0
    %v272 = vmul.f32 %v194, 0.2
    %v273 = vmul.f32 %v197, 0.2
    %v274 = vmul.f32 %v202, 0.2
    %v275 = vmul.f32 %v205, 0.2
    %v276 = vmul.f32 %v210, 0.2
    %v277 = vmul.f32 %v213, 0.2
    %v278 = vmul.f32 %v218, 0.2
    %v279 = vmul.f32 %v221, 0.2
    %v280 = vmul.f32 %v226, 0.2
    %v281 = vmul.f32 %v229, 0.2
    %v282 = vmul.f32 %v234, 0.2
    %v283 = vmul.f32 %v237, 0.2
    %v284 = vmul.f32 %v242, 0.2
    %v285 = vmul.f32 %v245, 0.2
    %v286 = vmul.f32 %v250, 0.2
    %v287 = vmul.f32 %v253, 0.2
    %v288 = vsel %vm256, %v194, %v272
    %v289 = vsel %vm257, %v197, %v273
    %v290 = vsel %vm258, %v202, %v274
    %v291 = vsel %vm259, %v205, %v275
    %v292 = vsel %vm260, %v210, %v276
    %v293 = vsel %vm261, %v213, %v277
    %v294 = vsel %vm262, %v218, %v278
    %v295 = vsel %vm263, %v221, %v279
    %v296 = vsel %vm264, %v226, %v280
    %v297 = vsel %vm265, %v229, %v281
    %v298 = vsel %vm266, %v234, %v282
    %v299 = vsel %vm267, %v237, %v283
    %v300 = vsel %vm268, %v242, %v284
    %v301 = vsel %vm269, %v245, %v285
    %v302 = vsel %vm270, %v250, %v286
    %v303 = vsel %vm271, %v253, %v287
    %v304 = vld [vmem:[%s3] sm:$0xff]
    %v305 = vld [vmem:[%s3 + $0x8] sm:$0xff]
    %v306 = vld [vmem:[%s3 + $0x10] sm:$0xff]
    %v307 = vld [vmem:[%s3 + $0x18] sm:$0xff]
    %v308 = vld [vmem:[%s3 + $0x20] sm:$0xff]
    %v309 = vld [vmem:[%s3 + $0x28] sm:$0xff]
    %v310 = vld [vmem:[%s3 + $0x30] sm:$0xff]
    %v311 = vld [vmem:[%s3 + $0x38] sm:$0xff]
    %v312 = vld [vmem:[%s3 + $0x40] sm:$0xff]
    %v313 = vld [vmem:[%s3 + $0x48] sm:$0xff]
    %v314 = vld [vmem:[%s3 + $0x50] sm:$0xff]
    %v315 = vld [vmem:[%s3 + $0x58] sm:$0xff]
    %v316 = vld [vmem:[%s3 + $0x60] sm:$0xff]
    %v317 = vld [vmem:[%s3 + $0x68] sm:$0xff]
    %v318 = vld [vmem:[%s3 + $0x70] sm:$0xff]
    %v319 = vld [vmem:[%s3 + $0x78] sm:$0xff]
    %v320 = vld [vmem:[%s4] sm:$0x1]
    %v322 = vlaneseq
    %v323 = vshrl.u32 %v322, 7
    %v324 = vsub.s32 0, %v323
    %v325 = vrot.slane %v320, %v324
    %327 = vmatprep.subr.mxu0 0.0
    %328 = vmatpush1.msra.mxu0 %v319
    %329 = vmatprep.subr.mxu0 0.0
    %330 = vmatpush1.msra.mxu0 %v318
    %331 = vmatprep.subr.mxu0 0.0
    %332 = vmatpush1.msra.mxu0 %v317
    %333 = vmatprep.subr.mxu0 0.0
    %334 = vmatpush1.msra.mxu0 %v316
    %335 = vmatprep.subr.mxu0 0.0
    %336 = vmatpush1.msra.mxu0 %v315
    %337 = vmatprep.subr.mxu0 0.0
    %338 = vmatpush1.msra.mxu0 %v314
    %339 = vmatprep.subr.mxu0 0.0
    %340 = vmatpush1.msra.mxu0 %v313
    %341 = vmatprep.subr.mxu0 0.0
    %342 = vmatpush1.msra.mxu0 %v312
    %343 = vmatprep.subr.mxu0 0.0
    %344 = vmatpush1.msra.mxu0 %v311
    %345 = vmatprep.subr.mxu0 0.0
    %346 = vmatpush1.msra.mxu0 %v310
    %347 = vmatprep.subr.mxu0 0.0
    %348 = vmatpush1.msra.mxu0 %v309
    %349 = vmatprep.subr.mxu0 0.0
    %350 = vmatpush1.msra.mxu0 %v308
    %351 = vmatprep.subr.mxu0 0.0
    %352 = vmatpush1.msra.mxu0 %v307
    %353 = vmatprep.subr.mxu0 0.0
    %354 = vmatpush1.msra.mxu0 %v306
    %355 = vmatprep.subr.mxu0 0.0
    %356 = vmatpush1.msra.mxu0 %v305
    %357 = vmatprep.subr.mxu0 0.0
    %358 = vmatpush1.msra.mxu0 %v304
    %359 = vmatprep.subr.mxu0 0.0
    %360 = vmatpush2.msra.mxu0 0.0
    %361 = vmatprep.subr.mxu0 0.0
    %362 = vmatpush2.msra.mxu0 0.0
    %363 = vmatprep.subr.mxu0 0.0
    %364 = vmatpush2.msra.mxu0 0.0
    %365 = vmatprep.subr.mxu0 0.0
    %366 = vmatpush2.msra.mxu0 0.0
    %367 = vmatprep.subr.mxu0 0.0
    %368 = vmatpush2.msra.mxu0 0.0
    %369 = vmatprep.subr.mxu0 0.0
    %370 = vmatpush2.msra.mxu0 0.0
    %371 = vmatprep.subr.mxu0 0.0
    %372 = vmatpush2.msra.mxu0 0.0
    %373 = vmatprep.subr.mxu0 0.0
    %374 = vmatpush2.msra.mxu0 0.0
    %375 = vmatprep.subr.mxu0 0.0
    %376 = vmatpush2.msra.mxu0 0.0
    %377 = vmatprep.subr.mxu0 0.0
    %378 = vmatpush2.msra.mxu0 0.0
    %379 = vmatprep.subr.mxu0 0.0
    %380 = vmatpush2.msra.mxu0 0.0
    %381 = vmatprep.subr.mxu0 0.0
    %382 = vmatpush2.msra.mxu0 0.0
    %383 = vmatprep.subr.mxu0 0.0
    %384 = vmatpush2.msra.mxu0 0.0
    %385 = vmatprep.subr.mxu0 0.0
    %386 = vmatpush2.msra.mxu0 0.0
    %387 = vmatprep.subr.mxu0 0.0
    %388 = vmatpush2.msra.mxu0 0.0
    %389 = vmatprep.subr.mxu0 0.0
    %390 = vmatpush2.msra.mxu0 0.0
    %391 = vmatprep.mubr.f32.mxu0 0.0
    %392 = vmatmul.mubr.f32.gmra.mxu0 %v288
    %v393 = vpop.f32.mrf.mxu0
    %v394 = vadd.f32 %v325, %v393
    %v395 = vpop.f32.mrf.mxu0
    %396 = vmatprep.mubr.f32.mxu0 0.0
    %397 = vmatmul.mubr.f32.gmra.mxu0 %v289
    %v398 = vpop.f32.mrf.mxu0
    %v399 = vadd.f32 %v325, %v398
    %v400 = vpop.f32.mrf.mxu0
    %401 = vmatprep.mubr.f32.mxu0 0.0
    %402 = vmatmul.mubr.f32.gmra.mxu0 %v290
    %v403 = vpop.f32.mrf.mxu0
    %v404 = vadd.f32 %v325, %v403
    %v405 = vpop.f32.mrf.mxu0
    %406 = vmatprep.mubr.f32.mxu0 0.0
    %407 = vmatmul.mubr.f32.gmra.mxu0 %v291
    %v408 = vpop.f32.mrf.mxu0
    %v409 = vadd.f32 %v325, %v408
    %v410 = vpop.f32.mrf.mxu0
    %411 = vmatprep.mubr.f32.mxu0 0.0
    %412 = vmatmul.mubr.f32.gmra.mxu0 %v292
    %v413 = vpop.f32.mrf.mxu0
    %v414 = vadd.f32 %v325, %v413
    %v415 = vpop.f32.mrf.mxu0
    %416 = vmatprep.mubr.f32.mxu0 0.0
    %417 = vmatmul.mubr.f32.gmra.mxu0 %v293
    %v418 = vpop.f32.mrf.mxu0
    %v419 = vadd.f32 %v325, %v418
    %v420 = vpop.f32.mrf.mxu0
    %421 = vmatprep.mubr.f32.mxu0 0.0
    %422 = vmatmul.mubr.f32.gmra.mxu0 %v294
    %v423 = vpop.f32.mrf.mxu0
    %v424 = vadd.f32 %v325, %v423
    %v425 = vpop.f32.mrf.mxu0
    %426 = vmatprep.mubr.f32.mxu0 0.0
    %427 = vmatmul.mubr.f32.gmra.mxu0 %v295
    %v428 = vpop.f32.mrf.mxu0
    %v429 = vadd.f32 %v325, %v428
    %v430 = vpop.f32.mrf.mxu0
    %431 = vmatprep.mubr.f32.mxu0 0.0
    %432 = vmatmul.mubr.f32.gmra.mxu0 %v296
    %v433 = vpop.f32.mrf.mxu0
    %v434 = vadd.f32 %v325, %v433
    %v435 = vpop.f32.mrf.mxu0
    %436 = vmatprep.mubr.f32.mxu0 0.0
    %437 = vmatmul.mubr.f32.gmra.mxu0 %v297
    %v438 = vpop.f32.mrf.mxu0
    %v439 = vadd.f32 %v325, %v438
    %v440 = vpop.f32.mrf.mxu0
    %441 = vmatprep.mubr.f32.mxu0 0.0
    %442 = vmatmul.mubr.f32.gmra.mxu0 %v298
    %v443 = vpop.f32.mrf.mxu0
    %v444 = vadd.f32 %v325, %v443
    %v445 = vpop.f32.mrf.mxu0
    %446 = vmatprep.mubr.f32.mxu0 0.0
    %447 = vmatmul.mubr.f32.gmra.mxu0 %v299
    %v448 = vpop.f32.mrf.mxu0
    %v449 = vadd.f32 %v325, %v448
    %v450 = vpop.f32.mrf.mxu0
    %451 = vmatprep.mubr.f32.mxu0 0.0
    %452 = vmatmul.mubr.f32.gmra.mxu0 %v300
    %v453 = vpop.f32.mrf.mxu0
    %v454 = vadd.f32 %v325, %v453
    %v455 = vpop.f32.mrf.mxu0
    %456 = vmatprep.mubr.f32.mxu0 0.0
    %457 = vmatmul.mubr.f32.gmra.mxu0 %v301
    %v458 = vpop.f32.mrf.mxu0
    %v459 = vadd.f32 %v325, %v458
    %v460 = vpop.f32.mrf.mxu0
    %461 = vmatprep.mubr.f32.mxu0 0.0
    %462 = vmatmul.mubr.f32.gmra.mxu0 %v302
    %v463 = vpop.f32.mrf.mxu0
    %v464 = vadd.f32 %v325, %v463
    %v465 = vpop.f32.mrf.mxu0
    %466 = vmatprep.mubr.f32.mxu0 0.0
    %467 = vmatmul.mubr.f32.gmra.mxu0 %v303
    %v468 = vpop.f32.mrf.mxu0
    %v469 = vadd.f32 %v325, %v468
    %v470 = vpop.f32.mrf.mxu0
    %471 = vdwg.mxu0
    %vm472 = vcmask 15360
    %473 = vst.msk [vmem:[%s6] sm:$0xff] %vm472, %v394
    %474 = vst.msk [vmem:[%s6 + $0x8] sm:$0xff] %vm472, %v399
    %475 = vst.msk [vmem:[%s6 + $0x10] sm:$0xff] %vm472, %v404
    %476 = vst.msk [vmem:[%s6 + $0x18] sm:$0xff] %vm472, %v409
    %477 = vst.msk [vmem:[%s6 + $0x20] sm:$0xff] %vm472, %v414
    %478 = vst.msk [vmem:[%s6 + $0x28] sm:$0xff] %vm472, %v419
    %479 = vst.msk [vmem:[%s6 + $0x30] sm:$0xff] %vm472, %v424
    %480 = vst.msk [vmem:[%s6 + $0x38] sm:$0xff] %vm472, %v429
    %481 = vst.msk [vmem:[%s6 + $0x40] sm:$0xff] %vm472, %v434
    %482 = vst.msk [vmem:[%s6 + $0x48] sm:$0xff] %vm472, %v439
    %483 = vst.msk [vmem:[%s6 + $0x50] sm:$0xff] %vm472, %v444
    %484 = vst.msk [vmem:[%s6 + $0x58] sm:$0xff] %vm472, %v449
    %485 = vst.msk [vmem:[%s6 + $0x60] sm:$0xff] %vm472, %v454
    %486 = vst.msk [vmem:[%s6 + $0x68] sm:$0xff] %vm472, %v459
    %487 = vst.msk [vmem:[%s6 + $0x70] sm:$0xff] %vm472, %v464
    %488 = vst.msk [vmem:[%s6 + $0x78] sm:$0xff] %vm472, %v469
    %v489 = vpack.c.bf16 %v289, %v288
    %v490 = vpack.c.bf16 %v291, %v290
    %v491 = vpack.c.bf16 %v293, %v292
    %v492 = vpack.c.bf16 %v295, %v294
    %v493 = vpack.c.bf16 %v297, %v296
    %v494 = vpack.c.bf16 %v299, %v298
    %v495 = vpack.c.bf16 %v301, %v300
    %v496 = vpack.c.bf16 %v303, %v302
    %v505 = vunpack.c.l.b16 %v489
    %v506 = vunpack.c.h.b16 %v489
    %v507 = vunpack.c.l.b16 %v490
    %v508 = vunpack.c.h.b16 %v490
    %v509 = vunpack.c.l.b16 %v491
    %v510 = vunpack.c.h.b16 %v491
    %v511 = vunpack.c.l.b16 %v492
    %v512 = vunpack.c.h.b16 %v492
    %v513 = vunpack.c.l.b16 %v493
    %v514 = vunpack.c.h.b16 %v493
    %v515 = vunpack.c.l.b16 %v494
    %v516 = vunpack.c.h.b16 %v494
    %v517 = vunpack.c.l.b16 %v495
    %v518 = vunpack.c.h.b16 %v495
    %v519 = vunpack.c.l.b16 %v496
    %v520 = vunpack.c.h.b16 %v496
    %v521 = vpack.c.b16 %v505, %v505
    %v522 = vpack.c.b16 %v506, %v506
    %v523 = vpack.c.b16 %v507, %v507
    %v524 = vpack.c.b16 %v508, %v508
    %v525 = vpack.c.b16 %v509, %v509
    %v526 = vpack.c.b16 %v510, %v510
    %v527 = vpack.c.b16 %v511, %v511
    %v528 = vpack.c.b16 %v512, %v512
    %v529 = vpack.c.b16 %v513, %v513
    %v530 = vpack.c.b16 %v514, %v514
    %v531 = vpack.c.b16 %v515, %v515
    %v532 = vpack.c.b16 %v516, %v516
    %v533 = vpack.c.b16 %v517, %v517
    %v534 = vpack.c.b16 %v518, %v518
    %v535 = vpack.c.b16 %v519, %v519
    %v536 = vpack.c.b16 %v520, %v520
    %553 = vst [vmem:[#allocation2] sm:$0xf] %v521
    %554 = vst [vmem:[#allocation2 + $0x4] sm:$0xf] %v522
    %555 = vst [vmem:[#allocation2 + $0x8] sm:$0xf] %v523
    %556 = vst [vmem:[#allocation2 + $0xc] sm:$0xf] %v524
    %557 = vst [vmem:[#allocation2 + $0x10] sm:$0xf] %v525
    %558 = vst [vmem:[#allocation2 + $0x14] sm:$0xf] %v526
    %559 = vst [vmem:[#allocation2 + $0x18] sm:$0xf] %v527
    %560 = vst [vmem:[#allocation2 + $0x1c] sm:$0xf] %v528
    %561 = vst [vmem:[#allocation2 + $0x20] sm:$0xf] %v529
    %562 = vst [vmem:[#allocation2 + $0x24] sm:$0xf] %v530
    %563 = vst [vmem:[#allocation2 + $0x28] sm:$0xf] %v531
    %564 = vst [vmem:[#allocation2 + $0x2c] sm:$0xf] %v532
    %565 = vst [vmem:[#allocation2 + $0x30] sm:$0xf] %v533
    %566 = vst [vmem:[#allocation2 + $0x34] sm:$0xf] %v534
    %567 = vst [vmem:[#allocation2 + $0x38] sm:$0xf] %v535
    %568 = vst [vmem:[#allocation2 + $0x3c] sm:$0xf] %v536
    // Predicated region
    $region22: #{tpu_custom_call.1} parent=1 // pred_check
      _
    $region23: #{tpu_custom_call.1} parent=1 // pred_check_branch
      %570 = sbr.rel (0) target = $region25
    $region24: #{tpu_custom_call.1} parent=1 // pred_region
      %s572 = ssub.s32 1024, 1024
      %573 = vsyncadd [#allocation3], %s572
      %s574 = sshll.u32 [#allocation2], 4
      %s575 = int_to_ptr.vmem [resolvable:$true] %s574
      %580 = dma.vmem_to_hbm [thread:$0]  %s575, 1024, %s5, [#allocation3], 64, 64, 4
    $region25: #{tpu_custom_call.1} parent=1 // pred_fallthru
      _
    // Predicated region
    $region26: #{tpu_custom_call.1} parent=1 // pred_check
      _
    $region27: #{tpu_custom_call.1} parent=1 // pred_check_branch
      %582 = sbr.rel (0) target = $region29
    $region28: #{tpu_custom_call.1} parent=1 // pred_region
      _
    $region29: #{tpu_custom_call.1} parent=1 // pred_fallthru
      _
    // Predicated region
    $region30: #{tpu_custom_call.1} parent=1 // pred_check
      _
    $region31: #{tpu_custom_call.1} parent=1 // pred_check_branch
      %584 = sbr.rel (0) target = $region33
    $region32: #{tpu_custom_call.1} parent=1 // pred_region
      %585 = dma.done [#allocation3], 1024
    $region33: #{tpu_custom_call.1} parent=1 // pred_fallthru
      _
    // Predicated region
    $region34: #{tpu_custom_call.1} parent=1 // pred_check
      _
    $region35: #{tpu_custom_call.1} parent=1 // pred_check_branch
      %587 = sbr.rel (0) target = $region37
    $region36: #{tpu_custom_call.1} parent=1 // pred_region
      _
    $region37: #{tpu_custom_call.1} parent=1 // pred_fallthru
      _
    %588 = vsyncpa [#allocation3], 1

</llo_original>
